<compile_context>
chip_gen: v6e
topology: v6e:2x2x1
jax: 0.10.0
libtpu: 0.0.40
codegen_flags: <defaults>
</compile_context>

<pallas_src>
import functools

import jax
import jax.numpy as jnp
from jax import lax
from jax.experimental import pallas as pl
from jax.experimental.pallas import tpu as pltpu


def _reservoir_kernel(x_ref, w_ref, state_ref, bias_eff_ref,
                      out_ref, mean_ref, *, decay, inv_b):
    x = x_ref[...]                  # (B, in_dim), compute dtype
    w = w_ref[...]                  # (tile_n, in_dim), compute dtype
    state = state_ref[...]          # (1, tile_n), f32 (stored reservoir state)
    bias_eff = bias_eff_ref[...]    # (1, tile_n), f32 = state @ adj.T + bias (padded)

    # Exactly one MXU matmul: contract the shared last axis (PyTorch `linear`
    # layout, no transpose needed), f32 accumulation regardless of operand dtype.
    drive = lax.dot_general(
        x, w, dimension_numbers=(((1,), (1,)), ((), ())),
        preferred_element_type=jnp.float32)                       # (B, tile_n)

    new_state = jnp.tanh(drive + bias_eff)                        # f32 epilogue (VPU/EUP)

    # Closed form of n_steps lerps with loop-invariant new_state:
    #   temp_n = new + inertia^n * (state - new)
    temp = new_state + decay * (state - new_state)

    out_ref[...] = temp.astype(out_ref.dtype)
    # Fused persistent-state update: batch-mean on data already resident in vregs.
    mean_ref[...] = (jnp.sum(temp, axis=0, keepdims=True) * inv_b).astype(mean_ref.dtype)


def reservoir_forward(x, in_weight, adj, state, bias, *,
                      inertia=0.2, n_steps=1,
                      compute_dtype=jnp.float32, tile_n=None):
    """Returns (temp_state, updated_persistent_state): the module's return value
    plus what it writes into self.state.data (= temp_state.mean(0))."""
    B, in_dim = x.shape
    dim = in_weight.shape[0]
    f32 = jnp.float32

    # Constant recurrent drive: linear(state, adj) = state @ adj.T = adj @ state.
    # Independent of batch and of the step index, so fold it into an effective
    # bias row once instead of re-running a 1-row matmul inside the kernel
    # (removes the O(dim^2) adjacency from the hot path entirely).
    bias_eff = (adj.astype(f32) @ state.astype(f32) + bias.astype(f32)).reshape(1, dim)
    state_row = state.astype(f32).reshape(1, dim)

    # Pad the reservoir dimension to a multiple of 128 so output stores are
    # lane-dense and the MXU N dimension is full width.  Padded lanes carry
    # exact zeros (zero weights / bias / state -> tanh(0) = 0) and are sliced
    # off below, so nothing leaks into the mean.
    dim_p = ((dim + 127) // 128) * 128
    pad = dim_p - dim
    w = in_weight.astype(f32)
    if pad:
        w = jnp.pad(w, ((0, pad), (0, 0)))
        bias_eff = jnp.pad(bias_eff, ((0, 0), (0, pad)))
        state_row = jnp.pad(state_row, ((0, 0), (0, pad)))

    x_c = x.astype(compute_dtype)
    w_c = w.astype(compute_dtype)

    if tile_n is None:
        tile_n = next(t for t in (512, 256, 128) if dim_p % t == 0)
    grid = (dim_p // tile_n,)

    decay = float(inertia) ** int(n_steps)
    kernel = functools.partial(_reservoir_kernel, decay=decay, inv_b=1.0 / B)

    temp_p, mean_p = pl.pallas_call(
        kernel,
        out_shape=(jax.ShapeDtypeStruct((B, dim_p), f32),
                   jax.ShapeDtypeStruct((1, dim_p), f32)),
        grid=grid,
        in_specs=[
            pl.BlockSpec((B, in_dim), lambda j: (0, 0)),       # x (small, reused per N tile)
            pl.BlockSpec((tile_n, in_dim), lambda j: (j, 0)),  # in_weight rows for this tile
            pl.BlockSpec((1, tile_n), lambda j: (0, j)),       # stored state row
            pl.BlockSpec((1, tile_n), lambda j: (0, j)),       # effective bias row
        ],
        out_specs=(
            pl.BlockSpec((B, tile_n), lambda j: (0, j)),
            pl.BlockSpec((1, tile_n), lambda j: (0, j)),
        ),
        compiler_params=pltpu.CompilerParams(
            dimension_semantics=("parallel",)),                # shard N tiles across TCs (v7x)
    )(x_c, w_c, state_row, bias_eff)

    # TODO(synk): for very large in_dim, add an "arbitrary" K grid axis with an f32
    # accumulator scratch (and set vmem_limit_bytes) instead of one full-K weight block.
    temp = temp_p[:, :dim]
    new_persistent_state = mean_p[0, :dim]
    return temp, new_persistent_state


def _reference(x, in_weight, adj, state, bias, inertia, n_steps):
    new_state = jnp.tanh(x @ in_weight.T + state @ adj.T + bias)
    temp = jnp.broadcast_to(state, new_state.shape)
    for _ in range(n_steps):
        temp = inertia * temp + (1.0 - inertia) * new_state
    return temp


if __name__ == "__main__":
    B, in_dim, dim = 8, 32, 64
    inertia, n_steps = 0.2, 3

    key = jax.random.PRNGKey(0)
    kx, kw, kb, ks, ka = jax.random.split(key, 5)

    x = jax.random.normal(kx, (B, in_dim), dtype=jnp.float32)
    in_weight = jax.random.uniform(kw, (dim, in_dim), minval=-1.0, maxval=1.0)
    bias = jax.random.uniform(kb, (dim,), minval=-1.0, maxval=1.0)
    state = jax.random.normal(ks, (dim,), dtype=jnp.float32)
    # TODO(synk): the multinomial-based scale-free graph generator is host-side init
    # code (not the forward hot path); a directed ER 0/1 matrix stands in for it here.
    adj = (jax.random.uniform(ka, (dim, dim)) < 0.5).astype(jnp.float32)

    ref = _reference(x, in_weight, adj, state, bias, inertia, n_steps)

    # f32 path: matches the PyTorch fp32 forward to tight tolerance.
    temp, new_state = reservoir_forward(x, in_weight, adj, state, bias,
                                        inertia=inertia, n_steps=n_steps)
    jax.block_until_ready((temp, new_state))
    assert temp.shape == (B, dim) and new_state.shape == (dim,)
    assert jnp.allclose(temp, ref, atol=1e-5, rtol=1e-5)
    assert jnp.allclose(new_state, ref.mean(axis=0), atol=1e-5, rtol=1e-5)

    # bf16 matmul operands (f32 accumulation / epilogue): recommended on v6e/v7x
    # once dim scales up; checked against the f32 reference at loose tolerance.
    temp_bf, state_bf = reservoir_forward(x, in_weight, adj, state, bias,
                                          inertia=inertia, n_steps=n_steps,
                                          compute_dtype=jnp.bfloat16)
    jax.block_until_ready((temp_bf, state_bf))
    assert jnp.allclose(temp_bf, ref, atol=5e-2, rtol=5e-2)

    print("KERNEL_OK")
</pallas_src>

<mosaic_0001>
module attributes {stable_mosaic.version = 11 : i64} {
  func.func @_reservoir_kernel(%arg0: i32, %arg1: memref<8x32xf32, #tpu.memory_space<vmem>>, %arg2: memref<128x32xf32, #tpu.memory_space<vmem>>, %arg3: memref<1x128xf32, #tpu.memory_space<vmem>>, %arg4: memref<1x128xf32, #tpu.memory_space<vmem>>, %arg5: memref<8x128xf32, #tpu.memory_space<vmem>>, %arg6: memref<1x128xf32, #tpu.memory_space<vmem>>) attributes {dimension_semantics = [#tpu.dimension_semantics<parallel>], iteration_bounds = array<i64: 1>, scalar_prefetch = 0 : i64, scratch_operands = 0 : i64, tpu.core_type = #tpu.core_type<tc>, window_params = [{pipeline_mode = #tpu.pipeline_mode<synchronous>, transform_indices = @transform_0, window_bounds = array<i64: 8, 32>}, {transform_indices = @transform_1, window_bounds = array<i64: 128, 32>}, {transform_indices = @transform_2, window_bounds = array<i64: 1, 128>}, {transform_indices = @transform_3, window_bounds = array<i64: 1, 128>}, {transform_indices = @transform_4, window_bounds = array<i64: 8, 128>}, {transform_indices = @transform_5, window_bounds = array<i64: 1, 128>}]} {
    %c0 = arith.constant 0 : index
    %c0_0 = arith.constant 0 : index
    %0 = vector.load %arg1[%c0, %c0_0] : memref<8x32xf32, #tpu.memory_space<vmem>>, vector<8x32xf32>
    %c0_1 = arith.constant 0 : index
    %c0_2 = arith.constant 0 : index
    %1 = vector.load %arg2[%c0_1, %c0_2] : memref<128x32xf32, #tpu.memory_space<vmem>>, vector<128x32xf32>
    %c0_3 = arith.constant 0 : index
    %c0_4 = arith.constant 0 : index
    %2 = vector.load %arg3[%c0_3, %c0_4] : memref<1x128xf32, #tpu.memory_space<vmem>>, vector<1x128xf32>
    %c0_5 = arith.constant 0 : index
    %c0_6 = arith.constant 0 : index
    %3 = vector.load %arg4[%c0_5, %c0_6] : memref<1x128xf32, #tpu.memory_space<vmem>>, vector<1x128xf32>
    %cst = arith.constant dense<0.000000e+00> : vector<8x128xf32>
    %4 = tpu.matmul %0, %1, %cst {dimension_numbers = #tpu.dot_dimension_numbers<[1], [1], [0], [0], [0, 0, 1, 0], [], []>} : vector<8x32xf32>, vector<128x32xf32>, vector<8x128xf32> -> vector<8x128xf32>
    %5 = vector.broadcast %3 : vector<1x128xf32> to vector<8x128xf32>
    %6 = arith.addf %4, %5 : vector<8x128xf32>
    %7 = math.tanh %6 : vector<8x128xf32>
    %8 = vector.broadcast %2 : vector<1x128xf32> to vector<8x128xf32>
    %9 = arith.subf %8, %7 : vector<8x128xf32>
    %cst_7 = arith.constant 8.000000e-03 : f32
    %10 = vector.broadcast %cst_7 : f32 to vector<8x128xf32>
    %11 = arith.mulf %10, %9 : vector<8x128xf32>
    %12 = arith.addf %7, %11 : vector<8x128xf32>
    %c0_8 = arith.constant 0 : index
    %c0_9 = arith.constant 0 : index
    %13 = vector.load %arg5[%c0_8, %c0_9] : memref<8x128xf32, #tpu.memory_space<vmem>>, vector<8x128xf32>
    tpu.vector_store %arg5[%c0_8, %c0_9], %12 {strides = array<i32>} : memref<8x128xf32, #tpu.memory_space<vmem>>, vector<8x128xf32>,
    %cst_10 = arith.constant dense<0.000000e+00> : vector<128xf32>
    %14 = vector.multi_reduction <add>, %12, %cst_10 [0] : vector<8x128xf32> to vector<128xf32>
    %15 = vector.shape_cast %14 : vector<128xf32> to vector<1x128xf32>
    %cst_11 = arith.constant 1.250000e-01 : f32
    %16 = vector.broadcast %cst_11 : f32 to vector<1x128xf32>
    %17 = arith.mulf %15, %16 : vector<1x128xf32>
    %c0_12 = arith.constant 0 : index
    %c0_13 = arith.constant 0 : index
    %18 = vector.load %arg6[%c0_12, %c0_13] : memref<1x128xf32, #tpu.memory_space<vmem>>, vector<1x128xf32>
    tpu.vector_store %arg6[%c0_12, %c0_13], %17 {strides = array<i32>} : memref<1x128xf32, #tpu.memory_space<vmem>>, vector<1x128xf32>,
    return
  }
  func.func @transform_0(%arg0: i32) -> (i32, i32) {
    %c0_i32 = arith.constant 0 : i32
    %c0_i32_0 = arith.constant 0 : i32
    %c0_i32_1 = arith.constant 0 : i32
    return %c0_i32, %c0_i32_0 : i32, i32
  }
  func.func @transform_1(%arg0: i32) -> (i32, i32) {
    %c0_i32 = arith.constant 0 : i32
    %c0_i32_0 = arith.constant 0 : i32
    return %arg0, %c0_i32 : i32, i32
  }
  func.func @transform_2(%arg0: i32) -> (i32, i32) {
    %c0_i32 = arith.constant 0 : i32
    %c0_i32_0 = arith.constant 0 : i32
    return %c0_i32, %arg0 : i32, i32
  }
  func.func @transform_3(%arg0: i32) -> (i32, i32) {
    %c0_i32 = arith.constant 0 : i32
    %c0_i32_0 = arith.constant 0 : i32
    return %c0_i32, %arg0 : i32, i32
  }
  func.func @transform_4(%arg0: i32) -> (i32, i32) {
    %c0_i32 = arith.constant 0 : i32
    %c0_i32_0 = arith.constant 0 : i32
    return %c0_i32, %arg0 : i32, i32
  }
  func.func @transform_5(%arg0: i32) -> (i32, i32) {
    %c0_i32 = arith.constant 0 : i32
    %c0_i32_0 = arith.constant 0 : i32
    return %c0_i32, %arg0 : i32, i32
  }
}

</mosaic_0001>

<llo_original>
// kernel: tpu_custom_call.1
$region0: #{tpu_custom_call.1}
  #allocation0 [shape = 'u32[]', space=smem, size = 0x4, offset = 0x4, fixed_abs, tag = 'smem constant byte address 0x4 - core index']
  #allocation1 [shape = 'u32[144,128]{1,0:T(1,128)}', space=vmem, size = 0x12000, scoped, tag = 'internal scratch']
  %s0 = inlined_call_operand.vmem [shape: f32[8,32], index: 0, kind: input, shape index: {}]
  %s1 = inlined_call_operand.vmem [shape: f32[128,32], index: 1, kind: input, shape index: {}]
  %s2 = inlined_call_operand.vmem [shape: f32[1,128], index: 2, kind: input, shape index: {}]
  %s3 = inlined_call_operand.vmem [shape: f32[1,128], index: 3, kind: input, shape index: {}]
  %s4 = inlined_call_operand.hbm [shape: f32[8,128], index: 4, kind: output, shape index: {0}]
  %s5 = inlined_call_operand.hbm [shape: f32[1,128], index: 5, kind: output, shape index: {1}]
  %6 = xla_tuple %s4, %s5
  %s7 = sld [smem:[#allocation0]]
  $region34: #{tpu_custom_call.1} parent=0
    _
  %s9 = ssub.s32 1, %s7
  %s10 = scalar_select 0, %s9, %s7
  $region1: #{tpu_custom_call.1} parent=0
    #allocation2 [shape = 'u8[4096]{0}', space=vmem, size = 0x1000, scoped, tag = 'output window, operand 0, single buffered']
    #allocation3 [shape = 's32[1]{0}', space=sflag, size = 0x4, scoped, tag = 'scoped memory for tpu_custom_call.1']
    #allocation4 [shape = 'u8[512]{0}', space=vmem, size = 0x400, scoped, tag = 'output window, operand 1, single buffered']
    #allocation5 [shape = 's32[1]{0}', space=sflag, size = 0x4, scoped, tag = 'scoped memory for tpu_custom_call.1']
    %11 = vsyncpa [#allocation3], 0
    %12 = vsyncpa [#allocation5], 0
    // Predicated region
    $region2: #{tpu_custom_call.1} parent=1 // pred_check
      _
    $region3: #{tpu_custom_call.1} parent=1 // pred_check_branch
      %14 = sbr.rel (0) target = $region5
    $region4: #{tpu_custom_call.1} parent=1 // pred_region
      _
    $region5: #{tpu_custom_call.1} parent=1 // pred_fallthru
      _
    // Predicated region
    $region6: #{tpu_custom_call.1} parent=1 // pred_check
      _
    $region7: #{tpu_custom_call.1} parent=1 // pred_check_branch
      %16 = sbr.rel (0) target = $region9
    $region8: #{tpu_custom_call.1} parent=1 // pred_region
      _
    $region9: #{tpu_custom_call.1} parent=1 // pred_fallthru
      _
    // Predicated region
    $region10: #{tpu_custom_call.1} parent=1 // pred_check
      _
    $region11: #{tpu_custom_call.1} parent=1 // pred_check_branch
      %18 = sbr.rel (0) target = $region13
    $region12: #{tpu_custom_call.1} parent=1 // pred_region
      _
    $region13: #{tpu_custom_call.1} parent=1 // pred_fallthru
      _
    // Predicated region
    $region14: #{tpu_custom_call.1} parent=1 // pred_check
      _
    $region15: #{tpu_custom_call.1} parent=1 // pred_check_branch
      %20 = sbr.rel (0) target = $region17
    $region16: #{tpu_custom_call.1} parent=1 // pred_region
      _
    $region17: #{tpu_custom_call.1} parent=1 // pred_fallthru
      _
    %v21 = vld [vmem:[%s0] sm:$0xff]
    %v22 = vld [vmem:[%s1] sm:$0xff]
    %v23 = vld [vmem:[%s1 + $0x8] sm:$0xff]
    %v24 = vld [vmem:[%s1 + $0x10] sm:$0xff]
    %v25 = vld [vmem:[%s1 + $0x18] sm:$0xff]
    %v26 = vld [vmem:[%s1 + $0x20] sm:$0xff]
    %v27 = vld [vmem:[%s1 + $0x28] sm:$0xff]
    %v28 = vld [vmem:[%s1 + $0x30] sm:$0xff]
    %v29 = vld [vmem:[%s1 + $0x38] sm:$0xff]
    %v30 = vld [vmem:[%s1 + $0x40] sm:$0xff]
    %v31 = vld [vmem:[%s1 + $0x48] sm:$0xff]
    %v32 = vld [vmem:[%s1 + $0x50] sm:$0xff]
    %v33 = vld [vmem:[%s1 + $0x58] sm:$0xff]
    %v34 = vld [vmem:[%s1 + $0x60] sm:$0xff]
    %v35 = vld [vmem:[%s1 + $0x68] sm:$0xff]
    %v36 = vld [vmem:[%s1 + $0x70] sm:$0xff]
    %v37 = vld [vmem:[%s1 + $0x78] sm:$0xff]
    %v38 = vld [vmem:[%s2] sm:$0x1]
    %v39 = vld [vmem:[%s3] sm:$0x1]
    %v41 = vlaneseq
    %v42 = vshrl.u32 %v41, 7
    %v43 = vsub.s32 0, %v42
    %v44 = vrot.slane %v39, %v43
    %vm46 = vcmask 261120
    %v48 = vsel %vm46, %v21, 0
    %v51 = vsel %vm46, %v22, 0
    %v54 = vsel %vm46, %v23, 0
    %v57 = vsel %vm46, %v24, 0
    %v60 = vsel %vm46, %v25, 0
    %v63 = vsel %vm46, %v26, 0
    %v66 = vsel %vm46, %v27, 0
    %v69 = vsel %vm46, %v28, 0
    %v72 = vsel %vm46, %v29, 0
    %v75 = vsel %vm46, %v30, 0
    %v78 = vsel %vm46, %v31, 0
    %v81 = vsel %vm46, %v32, 0
    %v84 = vsel %vm46, %v33, 0
    %v87 = vsel %vm46, %v34, 0
    %v90 = vsel %vm46, %v35, 0
    %v93 = vsel %vm46, %v36, 0
    %v96 = vsel %vm46, %v37, 0
    %98 = vmatprep.subr.mxu0 0.0
    %99 = vmatpush1.xpose.msra.mxu0 %v96
    %100 = vmatprep.subr.mxu0 0.0
    %101 = vmatpush1.xpose.msra.mxu0 %v93
    %102 = vmatprep.subr.mxu0 0.0
    %103 = vmatpush1.xpose.msra.mxu0 %v90
    %104 = vmatprep.subr.mxu0 0.0
    %105 = vmatpush1.xpose.msra.mxu0 %v87
    %106 = vmatprep.subr.mxu0 0.0
    %107 = vmatpush1.xpose.msra.mxu0 %v84
    %108 = vmatprep.subr.mxu0 0.0
    %109 = vmatpush1.xpose.msra.mxu0 %v81
    %110 = vmatprep.subr.mxu0 0.0
    %111 = vmatpush1.xpose.msra.mxu0 %v78
    %112 = vmatprep.subr.mxu0 0.0
    %113 = vmatpush1.xpose.msra.mxu0 %v75
    %114 = vmatprep.subr.mxu0 0.0
    %115 = vmatpush1.xpose.msra.mxu0 %v72
    %116 = vmatprep.subr.mxu0 0.0
    %117 = vmatpush1.xpose.msra.mxu0 %v69
    %118 = vmatprep.subr.mxu0 0.0
    %119 = vmatpush1.xpose.msra.mxu0 %v66
    %120 = vmatprep.subr.mxu0 0.0
    %121 = vmatpush1.xpose.msra.mxu0 %v63
    %122 = vmatprep.subr.mxu0 0.0
    %123 = vmatpush1.xpose.msra.mxu0 %v60
    %124 = vmatprep.subr.mxu0 0.0
    %125 = vmatpush1.xpose.msra.mxu0 %v57
    %126 = vmatprep.subr.mxu0 0.0
    %127 = vmatpush1.xpose.msra.mxu0 %v54
    %128 = vmatprep.subr.mxu0 0.0
    %129 = vmatpush1.xpose.msra.mxu0 %v51
    %130 = vmatprep.subr.mxu0 0.0
    %131 = vmatpush2.xpose.msra.mxu0 0.0
    %132 = vmatprep.subr.mxu0 0.0
    %133 = vmatpush2.xpose.msra.mxu0 0.0
    %134 = vmatprep.subr.mxu0 0.0
    %135 = vmatpush2.xpose.msra.mxu0 0.0
    %136 = vmatprep.subr.mxu0 0.0
    %137 = vmatpush2.xpose.msra.mxu0 0.0
    %138 = vmatprep.subr.mxu0 0.0
    %139 = vmatpush2.xpose.msra.mxu0 0.0
    %140 = vmatprep.subr.mxu0 0.0
    %141 = vmatpush2.xpose.msra.mxu0 0.0
    %142 = vmatprep.subr.mxu0 0.0
    %143 = vmatpush2.xpose.msra.mxu0 0.0
    %144 = vmatprep.subr.mxu0 0.0
    %145 = vmatpush2.xpose.msra.mxu0 0.0
    %146 = vmatprep.subr.mxu0 0.0
    %147 = vmatpush2.xpose.msra.mxu0 0.0
    %148 = vmatprep.subr.mxu0 0.0
    %149 = vmatpush2.xpose.msra.mxu0 0.0
    %150 = vmatprep.subr.mxu0 0.0
    %151 = vmatpush2.xpose.msra.mxu0 0.0
    %152 = vmatprep.subr.mxu0 0.0
    %153 = vmatpush2.xpose.msra.mxu0 0.0
    %154 = vmatprep.subr.mxu0 0.0
    %155 = vmatpush2.xpose.msra.mxu0 0.0
    %156 = vmatprep.subr.mxu0 0.0
    %157 = vmatpush2.xpose.msra.mxu0 0.0
    %158 = vmatprep.subr.mxu0 0.0
    %159 = vmatpush2.xpose.msra.mxu0 0.0
    %160 = vmatprep.subr.mxu0 0.0
    %161 = vmatpush2.xpose.msra.mxu0 0.0
    %162 = vmatprep.mubr.f32.mxu0 0.0
    %163 = vmatmul.mubr.f32.gmra.mxu0 %v48
    %v164 = vpop.f32.mrf.mxu0
    %v165 = vadd.f32 %v44, %v164
    %v166 = vpop.f32.mrf.mxu0
    %167 = vdwg.mxu0
    %v168 = vtanh.pop %v165
    %v170 = vlaneseq
    %v171 = vshrl.u32 %v170, 7
    %v172 = vsub.s32 0, %v171
    %v173 = vrot.slane %v38, %v172
    %v175 = vsub.f32 %v173, %v168
    %v176 = vmul.f32 %v175, 0.008
    %v177 = vadd.f32 %v168, %v176
    %178 = vst [vmem:[#allocation2] sm:$0xff] %v177
    %v179 = vrot.slane %v177, 4
    %v180 = vadd.f32 %v177, %v179
    %v181 = vrot.slane %v180, 2
    %v182 = vadd.f32 %v180, %v181
    %v183 = vrot.slane %v182, 1
    %v184 = vadd.f32 %v182, %v183
    %v185 = vmul.f32 %v184, 0.125
    %186 = vst [vmem:[#allocation4] sm:$0x1] %v185
    // Predicated region
    $region18: #{tpu_custom_call.1} parent=1 // pred_check
      _
    $region19: #{tpu_custom_call.1} parent=1 // pred_check_branch
      %188 = sbr.rel (0) target = $region21
    $region20: #{tpu_custom_call.1} parent=1 // pred_region
      %s190 = ssub.s32 128, 128
      %191 = vsyncadd [#allocation3], %s190
      %s193 = sshll.u32 [#allocation2], 4
      %s194 = int_to_ptr.vmem [resolvable:$true] %s193
      %196 = dma.vmem_to_hbm [thread:$0]  %s194, 128, %s4, [#allocation3]
    $region21: #{tpu_custom_call.1} parent=1 // pred_fallthru
      _
    // Predicated region
    $region22: #{tpu_custom_call.1} parent=1 // pred_check
      _
    $region23: #{tpu_custom_call.1} parent=1 // pred_check_branch
      %198 = sbr.rel (0) target = $region25
    $region24: #{tpu_custom_call.1} parent=1 // pred_region
      %s200 = ssub.s32 16, 16
      %201 = vsyncadd [#allocation5], %s200
      %s203 = sshll.u32 [#allocation4], 4
      %s204 = int_to_ptr.vmem [resolvable:$true] %s203
      %206 = dma.vmem_to_hbm [thread:$0]  %s204, 16, %s5, [#allocation5]
    $region25: #{tpu_custom_call.1} parent=1 // pred_fallthru
      _
    // Predicated region
    $region26: #{tpu_custom_call.1} parent=1 // pred_check
      _
    $region27: #{tpu_custom_call.1} parent=1 // pred_check_branch
      %208 = sbr.rel (0) target = $region29
    $region28: #{tpu_custom_call.1} parent=1 // pred_region
      %209 = dma.done [#allocation3], 128
    $region29: #{tpu_custom_call.1} parent=1 // pred_fallthru
      _
    // Predicated region
    $region30: #{tpu_custom_call.1} parent=1 // pred_check
      _
    $region31: #{tpu_custom_call.1} parent=1 // pred_check_branch
      %211 = sbr.rel (0) target = $region33
    $region32: #{tpu_custom_call.1} parent=1 // pred_region
      %212 = dma.done [#allocation5], 16
    $region33: #{tpu_custom_call.1} parent=1 // pred_fallthru
      _
    %213 = vsyncpa [#allocation3], 1
    %214 = vsyncpa [#allocation5], 1

</llo_original>
